<compile_context>
chip_gen: v5e
topology: v5e:2x2
jax: 0.10.0
libtpu: 0.0.40
codegen_flags: <defaults>
</compile_context>

<pallas_src>
import jax
import jax.numpy as jnp
from jax.experimental import pallas as pl
from jax.experimental.pallas import tpu as pltpu


def value_network_kernel(x2d_ref, lens_ref, h0_ref, c0_ref,
                         wih_t_ref, whh_t_ref, b_ref,
                         w1_t_ref, b1_ref, w2_row_ref, b2_ref,
                         out_ref):
    Bp, H = h0_ref.shape
    T = x2d_ref.shape[0] // Bp

    # Hoisted input projection: one big matmul + bias, outside the recurrence.
    xw = (jnp.dot(x2d_ref[...], wih_t_ref[...],
                  preferred_element_type=jnp.float32)
          + b_ref[...])                                  # (T*Bp, 4H)

    whh_t = whh_t_ref[...]                               # (H, 4H), pre-transposed
    lens = lens_ref[...]                                 # (Bp, 1) int32
    h = h0_ref[...]                                      # (Bp, H)
    c = c0_ref[...]

    # Fully-unrolled recurrence: only the h-projection hits the MXU per step.
    for t in range(T):
        gates = xw[t * Bp:(t + 1) * Bp, :] + jnp.dot(
            h, whh_t, preferred_element_type=jnp.float32)   # (Bp, 4H)
        sg = jax.nn.sigmoid(gates)                       # full-width EUP
        th = jnp.tanh(gates)                             # full-width EUP
        i_g = sg[:, 0:H]
        f_g = sg[:, H:2 * H]
        g_g = th[:, 2 * H:3 * H]
        o_g = sg[:, 3 * H:4 * H]
        c_new = f_g * c + i_g * g_g
        h_new = o_g * jnp.tanh(c_new)
        live = t < lens                                  # (Bp, 1) bool
        h = jnp.where(live, h_new, h)                    # freeze finished rows
        c = jnp.where(live, c_new, c)

    # Value head: relu(dropout(linear1(h_n))) -> linear2 ; dropout = identity (eval).
    # TODO(synk): training-mode dropout (p=0.05) randomness not reproduced.
    z = jnp.dot(h, w1_t_ref[...], preferred_element_type=jnp.float32) + b1_ref[...]
    z = jnp.maximum(z, 0.0)
    # N=1 output: VPU multiply + lane reduce instead of a 1-column MXU matmul.
    v = jnp.sum(z * w2_row_ref[...], axis=-1, keepdims=True) + b2_ref[...]
    out_ref[...] = v                                     # (Bp, 1)


def value_network_forward(x_padded, lengths, h0, c0, params):
    """x_padded: [T_max, B, D]; lengths: [B, 1] int32; h0/c0: [1, B, H]. Returns [B]."""
    T, B, D = x_padded.shape

    # Pad batch to a full sublane group (8) — layout plumbing in XLA, sliced off below.
    Bp = max(8, ((B + 7) // 8) * 8)
    pad_b = Bp - B
    x_p = jnp.pad(x_padded, ((0, 0), (0, pad_b), (0, 0)))
    lens_p = jnp.pad(lengths, ((0, pad_b), (0, 0)))      # padded rows: length 0 -> frozen
    h0_p = jnp.pad(h0[0], ((0, pad_b), (0, 0)))
    c0_p = jnp.pad(c0[0], ((0, pad_b), (0, 0)))

    # Layout plumbing done once in the wrapper: row-collapsed inputs, pre-transposed weights.
    x2d = x_p.reshape(T * Bp, D)                         # (T*Bp, D)
    wih_t = params["w_ih"].T                             # (D, 4H)
    whh_t = params["w_hh"].T                             # (H, 4H)
    w1_t = params["w1"].T                                # (H, H)
    w2_row = params["w2"]                                # (1, H)
    # NOTE: on v6e/v7x the matmul operands could additionally be cast to bf16
    # (keeping fp32 h/c state + accumulation); kept fp32 here for exact parity.

    vmem = pl.BlockSpec(memory_space=pltpu.MemorySpace.VMEM)
    out = pl.pallas_call(
        value_network_kernel,
        out_shape=jax.ShapeDtypeStruct((Bp, 1), jnp.float32),
        in_specs=[vmem] * 11,
        out_specs=vmem,
    )(x2d, lens_p, h0_p, c0_p,
      wih_t, whh_t, params["b"],
      w1_t, params["b1"], w2_row, params["b2"])
    return out[:B, 0]


# ---------------- pure-JAX reference (for correctness check) ----------------
def value_network_ref(x_padded, lengths, h0, c0, p):
    T, B, _ = x_padded.shape
    H = h0.shape[-1]
    h, c = h0[0], c0[0]
    for t in range(T):
        gates = x_padded[t] @ p["w_ih"].T + h @ p["w_hh"].T + p["b"]
        i = jax.nn.sigmoid(gates[:, 0:H])
        f = jax.nn.sigmoid(gates[:, H:2 * H])
        g = jnp.tanh(gates[:, 2 * H:3 * H])
        o = jax.nn.sigmoid(gates[:, 3 * H:4 * H])
        c_new = f * c + i * g
        h_new = o * jnp.tanh(c_new)
        m = (t < lengths).astype(jnp.float32)
        h = m * h_new + (1 - m) * h
        c = m * c_new + (1 - m) * c
    z = jnp.maximum(h @ p["w1"].T + p["b1"], 0.0)
    return (z @ p["w2"].T + p["b2"]).reshape(-1)


def xavier_normal(key, shape, gain=1.0):
    fan_out, fan_in = shape                              # PyTorch weight layout: (out, in)
    std = gain * (2.0 / (fan_in + fan_out)) ** 0.5
    return std * jax.random.normal(key, shape, dtype=jnp.float32)


if __name__ == "__main__":
    state_dim, hidden_dim = 16, 32
    seq_lengths = [8, 5, 3, 6]                           # list-of-tensors batch, batch=4
    B, T_max = len(seq_lengths), max(seq_lengths)

    key = jax.random.PRNGKey(0)
    k_seq, k_h, k_c, k_wih, k_whh, k_w1, k_w2 = jax.random.split(key, 7)

    # embedded_seq: list of [T_i, state_dim] -> padded time-major [T_max, B, D]
    seq_keys = jax.random.split(k_seq, B)
    seqs = [jax.random.normal(seq_keys[b], (seq_lengths[b], state_dim),
                              dtype=jnp.float32) for b in range(B)]
    x_padded = jnp.zeros((T_max, B, state_dim), jnp.float32)
    for b, s in enumerate(seqs):
        x_padded = x_padded.at[:s.shape[0], b, :].set(s)
    lengths = jnp.asarray(seq_lengths, jnp.int32).reshape(B, 1)

    # hidden from the policy network: ([1, B, H], [1, B, H])
    h0 = jax.random.normal(k_h, (1, B, hidden_dim), dtype=jnp.float32)
    c0 = jax.random.normal(k_c, (1, B, hidden_dim), dtype=jnp.float32)

    relu_gain = 2.0 ** 0.5                               # nn.init.calculate_gain('relu')
    params = {
        "w_ih": xavier_normal(k_wih, (4 * hidden_dim, state_dim)),   # LSTM weight_ih_l0
        "w_hh": xavier_normal(k_whh, (4 * hidden_dim, hidden_dim)),  # LSTM weight_hh_l0
        "b":    jnp.zeros((1, 4 * hidden_dim), jnp.float32),         # bias_ih + bias_hh (zero-init)
        "w1":   xavier_normal(k_w1, (hidden_dim, hidden_dim), gain=relu_gain),
        "b1":   jnp.zeros((1, hidden_dim), jnp.float32),
        "w2":   xavier_normal(k_w2, (1, hidden_dim), gain=relu_gain),
        "b2":   jnp.zeros((1, 1), jnp.float32),
    }

    out = value_network_forward(x_padded, lengths, h0, c0, params)
    out = jax.block_until_ready(out)

    ref = value_network_ref(x_padded, lengths, h0, c0, params)
    assert out.shape == (B,)
    assert jnp.allclose(out, ref, atol=1e-5, rtol=1e-5), (out, ref)
    print("KERNEL_OK")
</pallas_src>

<mosaic_0001>
module attributes {stable_mosaic.version = 11 : i64} {
  func.func @value_network_kernel(%arg0: memref<64x16xf32, #tpu.memory_space<vmem>>, %arg1: memref<8x1xi32, #tpu.memory_space<vmem>>, %arg2: memref<8x32xf32, #tpu.memory_space<vmem>>, %arg3: memref<8x32xf32, #tpu.memory_space<vmem>>, %arg4: memref<16x128xf32, #tpu.memory_space<vmem>>, %arg5: memref<32x128xf32, #tpu.memory_space<vmem>>, %arg6: memref<1x128xf32, #tpu.memory_space<vmem>>, %arg7: memref<32x32xf32, #tpu.memory_space<vmem>>, %arg8: memref<1x32xf32, #tpu.memory_space<vmem>>, %arg9: memref<1x32xf32, #tpu.memory_space<vmem>>, %arg10: memref<1x1xf32, #tpu.memory_space<vmem>>, %arg11: memref<8x1xf32, #tpu.memory_space<vmem>>) attributes {dimension_semantics = [], scalar_prefetch = 0 : i64, scratch_operands = 0 : i64, tpu.core_type = #tpu.core_type<tc>} {
    %c0 = arith.constant 0 : index
    %c0_0 = arith.constant 0 : index
    %0 = vector.load %arg0[%c0, %c0_0] : memref<64x16xf32, #tpu.memory_space<vmem>>, vector<64x16xf32>
    %c0_1 = arith.constant 0 : index
    %c0_2 = arith.constant 0 : index
    %1 = vector.load %arg4[%c0_1, %c0_2] : memref<16x128xf32, #tpu.memory_space<vmem>>, vector<16x128xf32>
    %cst = arith.constant dense<0.000000e+00> : vector<64x128xf32>
    %2 = tpu.matmul %0, %1, %cst {dimension_numbers = #tpu.dot_dimension_numbers<[1], [0], [0], [1], [0, 0, 1, 1], [], []>} : vector<64x16xf32>, vector<16x128xf32>, vector<64x128xf32> -> vector<64x128xf32>
    %c0_3 = arith.constant 0 : index
    %c0_4 = arith.constant 0 : index
    %3 = vector.load %arg6[%c0_3, %c0_4] : memref<1x128xf32, #tpu.memory_space<vmem>>, vector<1x128xf32>
    %4 = vector.broadcast %3 : vector<1x128xf32> to vector<64x128xf32>
    %5 = arith.addf %2, %4 : vector<64x128xf32>
    %c0_5 = arith.constant 0 : index
    %c0_6 = arith.constant 0 : index
    %6 = vector.load %arg5[%c0_5, %c0_6] : memref<32x128xf32, #tpu.memory_space<vmem>>, vector<32x128xf32>
    %c0_7 = arith.constant 0 : index
    %c0_8 = arith.constant 0 : index
    %7 = vector.load %arg1[%c0_7, %c0_8] : memref<8x1xi32, #tpu.memory_space<vmem>>, vector<8x1xi32>
    %c0_9 = arith.constant 0 : index
    %c0_10 = arith.constant 0 : index
    %8 = vector.load %arg2[%c0_9, %c0_10] : memref<8x32xf32, #tpu.memory_space<vmem>>, vector<8x32xf32>
    %c0_11 = arith.constant 0 : index
    %c0_12 = arith.constant 0 : index
    %9 = vector.load %arg3[%c0_11, %c0_12] : memref<8x32xf32, #tpu.memory_space<vmem>>, vector<8x32xf32>
    %10 = vector.extract_strided_slice %5 {offsets = [0, 0], sizes = [8, 128], strides = [1, 1]} : vector<64x128xf32> to vector<8x128xf32>
    %cst_13 = arith.constant dense<0.000000e+00> : vector<8x128xf32>
    %11 = tpu.matmul %8, %6, %cst_13 {dimension_numbers = #tpu.dot_dimension_numbers<[1], [0], [0], [1], [0, 0, 1, 1], [], []>} : vector<8x32xf32>, vector<32x128xf32>, vector<8x128xf32> -> vector<8x128xf32>
    %12 = arith.addf %10, %11 : vector<8x128xf32>
    %13 = arith.negf %12 : vector<8x128xf32>
    %14 = math.exp %13 : vector<8x128xf32>
    %cst_14 = arith.constant 1.000000e+00 : f32
    %15 = vector.broadcast %cst_14 : f32 to vector<8x128xf32>
    %16 = arith.addf %15, %14 : vector<8x128xf32>
    %17 = arith.divf %15, %16 : vector<8x128xf32>
    %18 = math.tanh %12 : vector<8x128xf32>
    %19 = vector.extract_strided_slice %17 {offsets = [0, 0], sizes = [8, 32], strides = [1, 1]} : vector<8x128xf32> to vector<8x32xf32>
    %20 = vector.extract_strided_slice %17 {offsets = [0, 32], sizes = [8, 32], strides = [1, 1]} : vector<8x128xf32> to vector<8x32xf32>
    %21 = vector.extract_strided_slice %18 {offsets = [0, 64], sizes = [8, 32], strides = [1, 1]} : vector<8x128xf32> to vector<8x32xf32>
    %22 = vector.extract_strided_slice %17 {offsets = [0, 96], sizes = [8, 32], strides = [1, 1]} : vector<8x128xf32> to vector<8x32xf32>
    %23 = arith.mulf %20, %9 : vector<8x32xf32>
    %24 = arith.mulf %19, %21 : vector<8x32xf32>
    %25 = arith.addf %23, %24 : vector<8x32xf32>
    %26 = math.tanh %25 : vector<8x32xf32>
    %27 = arith.mulf %22, %26 : vector<8x32xf32>
    %c0_i32 = arith.constant 0 : i32
    %28 = vector.broadcast %c0_i32 : i32 to vector<8x1xi32>
    %29 = arith.cmpi sgt, %7, %28 : vector<8x1xi32>
    %30 = vector.shape_cast %29 : vector<8x1xi1> to vector<8x1xi1>
    %31 = vector.broadcast %30 : vector<8x1xi1> to vector<8x32xi1>
    %32 = arith.select %31, %27, %8 : vector<8x32xi1>, vector<8x32xf32>
    %33 = vector.shape_cast %29 : vector<8x1xi1> to vector<8x1xi1>
    %34 = vector.broadcast %33 : vector<8x1xi1> to vector<8x32xi1>
    %35 = arith.select %34, %25, %9 : vector<8x32xi1>, vector<8x32xf32>
    %36 = vector.extract_strided_slice %5 {offsets = [8, 0], sizes = [8, 128], strides = [1, 1]} : vector<64x128xf32> to vector<8x128xf32>
    %cst_15 = arith.constant dense<0.000000e+00> : vector<8x128xf32>
    %37 = tpu.matmul %32, %6, %cst_15 {dimension_numbers = #tpu.dot_dimension_numbers<[1], [0], [0], [1], [0, 0, 1, 1], [], []>} : vector<8x32xf32>, vector<32x128xf32>, vector<8x128xf32> -> vector<8x128xf32>
    %38 = arith.addf %36, %37 : vector<8x128xf32>
    %39 = arith.negf %38 : vector<8x128xf32>
    %40 = math.exp %39 : vector<8x128xf32>
    %cst_16 = arith.constant 1.000000e+00 : f32
    %41 = vector.broadcast %cst_16 : f32 to vector<8x128xf32>
    %42 = arith.addf %41, %40 : vector<8x128xf32>
    %43 = arith.divf %41, %42 : vector<8x128xf32>
    %44 = math.tanh %38 : vector<8x128xf32>
    %45 = vector.extract_strided_slice %43 {offsets = [0, 0], sizes = [8, 32], strides = [1, 1]} : vector<8x128xf32> to vector<8x32xf32>
    %46 = vector.extract_strided_slice %43 {offsets = [0, 32], sizes = [8, 32], strides = [1, 1]} : vector<8x128xf32> to vector<8x32xf32>
    %47 = vector.extract_strided_slice %44 {offsets = [0, 64], sizes = [8, 32], strides = [1, 1]} : vector<8x128xf32> to vector<8x32xf32>
    %48 = vector.extract_strided_slice %43 {offsets = [0, 96], sizes = [8, 32], strides = [1, 1]} : vector<8x128xf32> to vector<8x32xf32>
    %49 = arith.mulf %46, %35 : vector<8x32xf32>
    %50 = arith.mulf %45, %47 : vector<8x32xf32>
    %51 = arith.addf %49, %50 : vector<8x32xf32>
    %52 = math.tanh %51 : vector<8x32xf32>
    %53 = arith.mulf %48, %52 : vector<8x32xf32>
    %c1_i32 = arith.constant 1 : i32
    %54 = vector.broadcast %c1_i32 : i32 to vector<8x1xi32>
    %55 = arith.cmpi sgt, %7, %54 : vector<8x1xi32>
    %56 = vector.shape_cast %55 : vector<8x1xi1> to vector<8x1xi1>
    %57 = vector.broadcast %56 : vector<8x1xi1> to vector<8x32xi1>
    %58 = arith.select %57, %53, %32 : vector<8x32xi1>, vector<8x32xf32>
    %59 = vector.shape_cast %55 : vector<8x1xi1> to vector<8x1xi1>
    %60 = vector.broadcast %59 : vector<8x1xi1> to vector<8x32xi1>
    %61 = arith.select %60, %51, %35 : vector<8x32xi1>, vector<8x32xf32>
    %62 = vector.extract_strided_slice %5 {offsets = [16, 0], sizes = [8, 128], strides = [1, 1]} : vector<64x128xf32> to vector<8x128xf32>
    %cst_17 = arith.constant dense<0.000000e+00> : vector<8x128xf32>
    %63 = tpu.matmul %58, %6, %cst_17 {dimension_numbers = #tpu.dot_dimension_numbers<[1], [0], [0], [1], [0, 0, 1, 1], [], []>} : vector<8x32xf32>, vector<32x128xf32>, vector<8x128xf32> -> vector<8x128xf32>
    %64 = arith.addf %62, %63 : vector<8x128xf32>
    %65 = arith.negf %64 : vector<8x128xf32>
    %66 = math.exp %65 : vector<8x128xf32>
    %cst_18 = arith.constant 1.000000e+00 : f32
    %67 = vector.broadcast %cst_18 : f32 to vector<8x128xf32>
    %68 = arith.addf %67, %66 : vector<8x128xf32>
    %69 = arith.divf %67, %68 : vector<8x128xf32>
    %70 = math.tanh %64 : vector<8x128xf32>
    %71 = vector.extract_strided_slice %69 {offsets = [0, 0], sizes = [8, 32], strides = [1, 1]} : vector<8x128xf32> to vector<8x32xf32>
    %72 = vector.extract_strided_slice %69 {offsets = [0, 32], sizes = [8, 32], strides = [1, 1]} : vector<8x128xf32> to vector<8x32xf32>
    %73 = vector.extract_strided_slice %70 {offsets = [0, 64], sizes = [8, 32], strides = [1, 1]} : vector<8x128xf32> to vector<8x32xf32>
    %74 = vector.extract_strided_slice %69 {offsets = [0, 96], sizes = [8, 32], strides = [1, 1]} : vector<8x128xf32> to vector<8x32xf32>
    %75 = arith.mulf %72, %61 : vector<8x32xf32>
    %76 = arith.mulf %71, %73 : vector<8x32xf32>
    %77 = arith.addf %75, %76 : vector<8x32xf32>
    %78 = math.tanh %77 : vector<8x32xf32>
    %79 = arith.mulf %74, %78 : vector<8x32xf32>
    %c2_i32 = arith.constant 2 : i32
    %80 = vector.broadcast %c2_i32 : i32 to vector<8x1xi32>
    %81 = arith.cmpi sgt, %7, %80 : vector<8x1xi32>
    %82 = vector.shape_cast %81 : vector<8x1xi1> to vector<8x1xi1>
    %83 = vector.broadcast %82 : vector<8x1xi1> to vector<8x32xi1>
    %84 = arith.select %83, %79, %58 : vector<8x32xi1>, vector<8x32xf32>
    %85 = vector.shape_cast %81 : vector<8x1xi1> to vector<8x1xi1>
    %86 = vector.broadcast %85 : vector<8x1xi1> to vector<8x32xi1>
    %87 = arith.select %86, %77, %61 : vector<8x32xi1>, vector<8x32xf32>
    %88 = vector.extract_strided_slice %5 {offsets = [24, 0], sizes = [8, 128], strides = [1, 1]} : vector<64x128xf32> to vector<8x128xf32>
    %cst_19 = arith.constant dense<0.000000e+00> : vector<8x128xf32>
    %89 = tpu.matmul %84, %6, %cst_19 {dimension_numbers = #tpu.dot_dimension_numbers<[1], [0], [0], [1], [0, 0, 1, 1], [], []>} : vector<8x32xf32>, vector<32x128xf32>, vector<8x128xf32> -> vector<8x128xf32>
    %90 = arith.addf %88, %89 : vector<8x128xf32>
    %91 = arith.negf %90 : vector<8x128xf32>
    %92 = math.exp %91 : vector<8x128xf32>
    %cst_20 = arith.constant 1.000000e+00 : f32
    %93 = vector.broadcast %cst_20 : f32 to vector<8x128xf32>
    %94 = arith.addf %93, %92 : vector<8x128xf32>
    %95 = arith.divf %93, %94 : vector<8x128xf32>
    %96 = math.tanh %90 : vector<8x128xf32>
    %97 = vector.extract_strided_slice %95 {offsets = [0, 0], sizes = [8, 32], strides = [1, 1]} : vector<8x128xf32> to vector<8x32xf32>
    %98 = vector.extract_strided_slice %95 {offsets = [0, 32], sizes = [8, 32], strides = [1, 1]} : vector<8x128xf32> to vector<8x32xf32>
    %99 = vector.extract_strided_slice %96 {offsets = [0, 64], sizes = [8, 32], strides = [1, 1]} : vector<8x128xf32> to vector<8x32xf32>
    %100 = vector.extract_strided_slice %95 {offsets = [0, 96], sizes = [8, 32], strides = [1, 1]} : vector<8x128xf32> to vector<8x32xf32>
    %101 = arith.mulf %98, %87 : vector<8x32xf32>
    %102 = arith.mulf %97, %99 : vector<8x32xf32>
    %103 = arith.addf %101, %102 : vector<8x32xf32>
    %104 = math.tanh %103 : vector<8x32xf32>
    %105 = arith.mulf %100, %104 : vector<8x32xf32>
    %c3_i32 = arith.constant 3 : i32
    %106 = vector.broadcast %c3_i32 : i32 to vector<8x1xi32>
    %107 = arith.cmpi sgt, %7, %106 : vector<8x1xi32>
    %108 = vector.shape_cast %107 : vector<8x1xi1> to vector<8x1xi1>
    %109 = vector.broadcast %108 : vector<8x1xi1> to vector<8x32xi1>
    %110 = arith.select %109, %105, %84 : vector<8x32xi1>, vector<8x32xf32>
    %111 = vector.shape_cast %107 : vector<8x1xi1> to vector<8x1xi1>
    %112 = vector.broadcast %111 : vector<8x1xi1> to vector<8x32xi1>
    %113 = arith.select %112, %103, %87 : vector<8x32xi1>, vector<8x32xf32>
    %114 = vector.extract_strided_slice %5 {offsets = [32, 0], sizes = [8, 128], strides = [1, 1]} : vector<64x128xf32> to vector<8x128xf32>
    %cst_21 = arith.constant dense<0.000000e+00> : vector<8x128xf32>
    %115 = tpu.matmul %110, %6, %cst_21 {dimension_numbers = #tpu.dot_dimension_numbers<[1], [0], [0], [1], [0, 0, 1, 1], [], []>} : vector<8x32xf32>, vector<32x128xf32>, vector<8x128xf32> -> vector<8x128xf32>
    %116 = arith.addf %114, %115 : vector<8x128xf32>
    %117 = arith.negf %116 : vector<8x128xf32>
    %118 = math.exp %117 : vector<8x128xf32>
    %cst_22 = arith.constant 1.000000e+00 : f32
    %119 = vector.broadcast %cst_22 : f32 to vector<8x128xf32>
    %120 = arith.addf %119, %118 : vector<8x128xf32>
    %121 = arith.divf %119, %120 : vector<8x128xf32>
    %122 = math.tanh %116 : vector<8x128xf32>
    %123 = vector.extract_strided_slice %121 {offsets = [0, 0], sizes = [8, 32], strides = [1, 1]} : vector<8x128xf32> to vector<8x32xf32>
    %124 = vector.extract_strided_slice %121 {offsets = [0, 32], sizes = [8, 32], strides = [1, 1]} : vector<8x128xf32> to vector<8x32xf32>
    %125 = vector.extract_strided_slice %122 {offsets = [0, 64], sizes = [8, 32], strides = [1, 1]} : vector<8x128xf32> to vector<8x32xf32>
    %126 = vector.extract_strided_slice %121 {offsets = [0, 96], sizes = [8, 32], strides = [1, 1]} : vector<8x128xf32> to vector<8x32xf32>
    %127 = arith.mulf %124, %113 : vector<8x32xf32>
    %128 = arith.mulf %123, %125 : vector<8x32xf32>
    %129 = arith.addf %127, %128 : vector<8x32xf32>
    %130 = math.tanh %129 : vector<8x32xf32>
    %131 = arith.mulf %126, %130 : vector<8x32xf32>
    %c4_i32 = arith.constant 4 : i32
    %132 = vector.broadcast %c4_i32 : i32 to vector<8x1xi32>
    %133 = arith.cmpi sgt, %7, %132 : vector<8x1xi32>
    %134 = vector.shape_cast %133 : vector<8x1xi1> to vector<8x1xi1>
    %135 = vector.broadcast %134 : vector<8x1xi1> to vector<8x32xi1>
    %136 = arith.select %135, %131, %110 : vector<8x32xi1>, vector<8x32xf32>
    %137 = vector.shape_cast %133 : vector<8x1xi1> to vector<8x1xi1>
    %138 = vector.broadcast %137 : vector<8x1xi1> to vector<8x32xi1>
    %139 = arith.select %138, %129, %113 : vector<8x32xi1>, vector<8x32xf32>
    %140 = vector.extract_strided_slice %5 {offsets = [40, 0], sizes = [8, 128], strides = [1, 1]} : vector<64x128xf32> to vector<8x128xf32>
    %cst_23 = arith.constant dense<0.000000e+00> : vector<8x128xf32>
    %141 = tpu.matmul %136, %6, %cst_23 {dimension_numbers = #tpu.dot_dimension_numbers<[1], [0], [0], [1], [0, 0, 1, 1], [], []>} : vector<8x32xf32>, vector<32x128xf32>, vector<8x128xf32> -> vector<8x128xf32>
    %142 = arith.addf %140, %141 : vector<8x128xf32>
    %143 = arith.negf %142 : vector<8x128xf32>
    %144 = math.exp %143 : vector<8x128xf32>
    %cst_24 = arith.constant 1.000000e+00 : f32
    %145 = vector.broadcast %cst_24 : f32 to vector<8x128xf32>
    %146 = arith.addf %145, %144 : vector<8x128xf32>
    %147 = arith.divf %145, %146 : vector<8x128xf32>
    %148 = math.tanh %142 : vector<8x128xf32>
    %149 = vector.extract_strided_slice %147 {offsets = [0, 0], sizes = [8, 32], strides = [1, 1]} : vector<8x128xf32> to vector<8x32xf32>
    %150 = vector.extract_strided_slice %147 {offsets = [0, 32], sizes = [8, 32], strides = [1, 1]} : vector<8x128xf32> to vector<8x32xf32>
    %151 = vector.extract_strided_slice %148 {offsets = [0, 64], sizes = [8, 32], strides = [1, 1]} : vector<8x128xf32> to vector<8x32xf32>
    %152 = vector.extract_strided_slice %147 {offsets = [0, 96], sizes = [8, 32], strides = [1, 1]} : vector<8x128xf32> to vector<8x32xf32>
    %153 = arith.mulf %150, %139 : vector<8x32xf32>
    %154 = arith.mulf %149, %151 : vector<8x32xf32>
    %155 = arith.addf %153, %154 : vector<8x32xf32>
    %156 = math.tanh %155 : vector<8x32xf32>
    %157 = arith.mulf %152, %156 : vector<8x32xf32>
    %c5_i32 = arith.constant 5 : i32
    %158 = vector.broadcast %c5_i32 : i32 to vector<8x1xi32>
    %159 = arith.cmpi sgt, %7, %158 : vector<8x1xi32>
    %160 = vector.shape_cast %159 : vector<8x1xi1> to vector<8x1xi1>
    %161 = vector.broadcast %160 : vector<8x1xi1> to vector<8x32xi1>
    %162 = arith.select %161, %157, %136 : vector<8x32xi1>, vector<8x32xf32>
    %163 = vector.shape_cast %159 : vector<8x1xi1> to vector<8x1xi1>
    %164 = vector.broadcast %163 : vector<8x1xi1> to vector<8x32xi1>
    %165 = arith.select %164, %155, %139 : vector<8x32xi1>, vector<8x32xf32>
    %166 = vector.extract_strided_slice %5 {offsets = [48, 0], sizes = [8, 128], strides = [1, 1]} : vector<64x128xf32> to vector<8x128xf32>
    %cst_25 = arith.constant dense<0.000000e+00> : vector<8x128xf32>
    %167 = tpu.matmul %162, %6, %cst_25 {dimension_numbers = #tpu.dot_dimension_numbers<[1], [0], [0], [1], [0, 0, 1, 1], [], []>} : vector<8x32xf32>, vector<32x128xf32>, vector<8x128xf32> -> vector<8x128xf32>
    %168 = arith.addf %166, %167 : vector<8x128xf32>
    %169 = arith.negf %168 : vector<8x128xf32>
    %170 = math.exp %169 : vector<8x128xf32>
    %cst_26 = arith.constant 1.000000e+00 : f32
    %171 = vector.broadcast %cst_26 : f32 to vector<8x128xf32>
    %172 = arith.addf %171, %170 : vector<8x128xf32>
    %173 = arith.divf %171, %172 : vector<8x128xf32>
    %174 = math.tanh %168 : vector<8x128xf32>
    %175 = vector.extract_strided_slice %173 {offsets = [0, 0], sizes = [8, 32], strides = [1, 1]} : vector<8x128xf32> to vector<8x32xf32>
    %176 = vector.extract_strided_slice %173 {offsets = [0, 32], sizes = [8, 32], strides = [1, 1]} : vector<8x128xf32> to vector<8x32xf32>
    %177 = vector.extract_strided_slice %174 {offsets = [0, 64], sizes = [8, 32], strides = [1, 1]} : vector<8x128xf32> to vector<8x32xf32>
    %178 = vector.extract_strided_slice %173 {offsets = [0, 96], sizes = [8, 32], strides = [1, 1]} : vector<8x128xf32> to vector<8x32xf32>
    %179 = arith.mulf %176, %165 : vector<8x32xf32>
    %180 = arith.mulf %175, %177 : vector<8x32xf32>
    %181 = arith.addf %179, %180 : vector<8x32xf32>
    %182 = math.tanh %181 : vector<8x32xf32>
    %183 = arith.mulf %178, %182 : vector<8x32xf32>
    %c6_i32 = arith.constant 6 : i32
    %184 = vector.broadcast %c6_i32 : i32 to vector<8x1xi32>
    %185 = arith.cmpi sgt, %7, %184 : vector<8x1xi32>
    %186 = vector.shape_cast %185 : vector<8x1xi1> to vector<8x1xi1>
    %187 = vector.broadcast %186 : vector<8x1xi1> to vector<8x32xi1>
    %188 = arith.select %187, %183, %162 : vector<8x32xi1>, vector<8x32xf32>
    %189 = vector.shape_cast %185 : vector<8x1xi1> to vector<8x1xi1>
    %190 = vector.broadcast %189 : vector<8x1xi1> to vector<8x32xi1>
    %191 = arith.select %190, %181, %165 : vector<8x32xi1>, vector<8x32xf32>
    %192 = vector.extract_strided_slice %5 {offsets = [56, 0], sizes = [8, 128], strides = [1, 1]} : vector<64x128xf32> to vector<8x128xf32>
    %cst_27 = arith.constant dense<0.000000e+00> : vector<8x128xf32>
    %193 = tpu.matmul %188, %6, %cst_27 {dimension_numbers = #tpu.dot_dimension_numbers<[1], [0], [0], [1], [0, 0, 1, 1], [], []>} : vector<8x32xf32>, vector<32x128xf32>, vector<8x128xf32> -> vector<8x128xf32>
    %194 = arith.addf %192, %193 : vector<8x128xf32>
    %195 = arith.negf %194 : vector<8x128xf32>
    %196 = math.exp %195 : vector<8x128xf32>
    %cst_28 = arith.constant 1.000000e+00 : f32
    %197 = vector.broadcast %cst_28 : f32 to vector<8x128xf32>
    %198 = arith.addf %197, %196 : vector<8x128xf32>
    %199 = arith.divf %197, %198 : vector<8x128xf32>
    %200 = math.tanh %194 : vector<8x128xf32>
    %201 = vector.extract_strided_slice %199 {offsets = [0, 0], sizes = [8, 32], strides = [1, 1]} : vector<8x128xf32> to vector<8x32xf32>
    %202 = vector.extract_strided_slice %199 {offsets = [0, 32], sizes = [8, 32], strides = [1, 1]} : vector<8x128xf32> to vector<8x32xf32>
    %203 = vector.extract_strided_slice %200 {offsets = [0, 64], sizes = [8, 32], strides = [1, 1]} : vector<8x128xf32> to vector<8x32xf32>
    %204 = vector.extract_strided_slice %199 {offsets = [0, 96], sizes = [8, 32], strides = [1, 1]} : vector<8x128xf32> to vector<8x32xf32>
    %205 = arith.mulf %202, %191 : vector<8x32xf32>
    %206 = arith.mulf %201, %203 : vector<8x32xf32>
    %207 = arith.addf %205, %206 : vector<8x32xf32>
    %208 = math.tanh %207 : vector<8x32xf32>
    %209 = arith.mulf %204, %208 : vector<8x32xf32>
    %c7_i32 = arith.constant 7 : i32
    %210 = vector.broadcast %c7_i32 : i32 to vector<8x1xi32>
    %211 = arith.cmpi sgt, %7, %210 : vector<8x1xi32>
    %212 = vector.shape_cast %211 : vector<8x1xi1> to vector<8x1xi1>
    %213 = vector.broadcast %212 : vector<8x1xi1> to vector<8x32xi1>
    %214 = arith.select %213, %209, %188 : vector<8x32xi1>, vector<8x32xf32>
    %c0_29 = arith.constant 0 : index
    %c0_30 = arith.constant 0 : index
    %215 = vector.load %arg7[%c0_29, %c0_30] : memref<32x32xf32, #tpu.memory_space<vmem>>, vector<32x32xf32>
    %cst_31 = arith.constant dense<0.000000e+00> : vector<8x32xf32>
    %216 = tpu.matmul %214, %215, %cst_31 {dimension_numbers = #tpu.dot_dimension_numbers<[1], [0], [0], [1], [0, 0, 1, 1], [], []>} : vector<8x32xf32>, vector<32x32xf32>, vector<8x32xf32> -> vector<8x32xf32>
    %c0_32 = arith.constant 0 : index
    %c0_33 = arith.constant 0 : index
    %217 = vector.load %arg8[%c0_32, %c0_33] : memref<1x32xf32, #tpu.memory_space<vmem>>, vector<1x32xf32>
    %218 = vector.broadcast %217 : vector<1x32xf32> to vector<8x32xf32>
    %219 = arith.addf %216, %218 : vector<8x32xf32>
    %cst_34 = arith.constant 0.000000e+00 : f32
    %220 = vector.broadcast %cst_34 : f32 to vector<8x32xf32>
    %221 = arith.maximumf %219, %220 : vector<8x32xf32>
    %c0_35 = arith.constant 0 : index
    %c0_36 = arith.constant 0 : index
    %222 = vector.load %arg9[%c0_35, %c0_36] : memref<1x32xf32, #tpu.memory_space<vmem>>, vector<1x32xf32>
    %223 = vector.broadcast %222 : vector<1x32xf32> to vector<8x32xf32>
    %224 = arith.mulf %221, %223 : vector<8x32xf32>
    %cst_37 = arith.constant dense<0.000000e+00> : vector<8xf32>
    %225 = vector.multi_reduction <add>, %224, %cst_37 [1] : vector<8x32xf32> to vector<8xf32>
    %226 = vector.shape_cast %225 : vector<8xf32> to vector<8x1xf32>
    %c0_38 = arith.constant 0 : index
    %c0_39 = arith.constant 0 : index
    %227 = vector.load %arg10[%c0_38, %c0_39] : memref<1x1xf32, #tpu.memory_space<vmem>>, vector<1x1xf32>
    %228 = vector.broadcast %227 : vector<1x1xf32> to vector<8x1xf32>
    %229 = arith.addf %226, %228 : vector<8x1xf32>
    %c0_40 = arith.constant 0 : index
    %c0_41 = arith.constant 0 : index
    %230 = vector.load %arg11[%c0_40, %c0_41] : memref<8x1xf32, #tpu.memory_space<vmem>>, vector<8x1xf32>
    tpu.vector_store %arg11[%c0_40, %c0_41], %229 {strides = array<i32>} : memref<8x1xf32, #tpu.memory_space<vmem>>, vector<8x1xf32>,
    return
  }
}

</mosaic_0001>

<llo_original>
// kernel: tpu_custom_call.1
$region0: #{tpu_custom_call.1}
  #allocation0 [shape = 'u32[]', space=smem, size = 0x4, offset = 0x4, fixed_abs, tag = 'smem constant byte address 0x4 - core index']
  #allocation1 [shape = 'u32[72,128]{1,0:T(1,128)}', space=vmem, size = 0x9000, scoped, tag = 'internal scratch']
  #allocation2 [shape = 'f32[1,1]{1,0:T(1,128)S(1)}', space=vmem, size = 0x200, scoped, tag = 'scoped memory for tpu_custom_call.1']
  %s0 = inlined_call_operand.vmem [shape: f32[64,16], index: 0, kind: input, shape index: {}]
  %s1 = inlined_call_operand.vmem [shape: s32[8,1], index: 1, kind: input, shape index: {}]
  %s2 = inlined_call_operand.vmem [shape: f32[8,32], index: 2, kind: input, shape index: {}]
  %s3 = inlined_call_operand.hbm [shape: f32[8,32], index: 3, kind: input, shape index: {}]
  %s4 = inlined_call_operand.vmem [shape: f32[16,128], index: 4, kind: input, shape index: {}]
  %s5 = inlined_call_operand.vmem [shape: f32[32,128], index: 5, kind: input, shape index: {}]
  %s6 = inlined_call_operand.vmem [shape: f32[1,128], index: 6, kind: input, shape index: {}]
  %s7 = inlined_call_operand.vmem [shape: f32[32,32], index: 7, kind: input, shape index: {}]
  %s8 = inlined_call_operand.vmem [shape: f32[1,32], index: 8, kind: input, shape index: {}]
  %s9 = inlined_call_operand.vmem [shape: f32[1,32], index: 9, kind: input, shape index: {}]
  %s10 = inlined_call_operand.<no memory space> [shape: f32[1,1], index: 10, kind: input, shape index: {}]
  %s11 = inlined_call_operand.vmem [shape: f32[8,1], index: 11, kind: output, shape index: {}]
  %s12 = sld [smem:[#allocation0]]
  $region58: #{tpu_custom_call.1} parent=0
    _
  %s14 = ssub.s32 1, %s12
  %s15 = scalar_select 0, %s14, %s12
  %v16 = vstv %s10
  %17 = vst [vmem:[#allocation2] sm:$0x1] %v16
  $region1: #{tpu_custom_call.1} parent=0
    #allocation3 [shape = 'u8[4096]{0}', space=vmem, size = 0x1000, scoped, tag = 'input window, operand 3, single buffered']
    #allocation4 [shape = 's32[1]{0}', space=sflag, size = 0x4, scoped, tag = 'scoped memory for tpu_custom_call.1']
    %18 = vsyncpa [#allocation4], 0
    // Predicated region
    $region2: #{tpu_custom_call.1} parent=1 // pred_check
      _
    $region3: #{tpu_custom_call.1} parent=1 // pred_check_branch
      %20 = sbr.rel (0) target = $region5
    $region4: #{tpu_custom_call.1} parent=1 // pred_region
      _
    $region5: #{tpu_custom_call.1} parent=1 // pred_fallthru
      _
    // Predicated region
    $region6: #{tpu_custom_call.1} parent=1 // pred_check
      _
    $region7: #{tpu_custom_call.1} parent=1 // pred_check_branch
      %22 = sbr.rel (0) target = $region9
    $region8: #{tpu_custom_call.1} parent=1 // pred_region
      _
    $region9: #{tpu_custom_call.1} parent=1 // pred_fallthru
      _
    // Predicated region
    $region10: #{tpu_custom_call.1} parent=1 // pred_check
      _
    $region11: #{tpu_custom_call.1} parent=1 // pred_check_branch
      %24 = sbr.rel (0) target = $region13
    $region12: #{tpu_custom_call.1} parent=1 // pred_region
      _
    $region13: #{tpu_custom_call.1} parent=1 // pred_fallthru
      _
    // Predicated region
    $region14: #{tpu_custom_call.1} parent=1 // pred_check
      _
    $region15: #{tpu_custom_call.1} parent=1 // pred_check_branch
      %26 = sbr.rel (0) target = $region17
    $region16: #{tpu_custom_call.1} parent=1 // pred_region
      %28 = vsyncadd [#allocation4], 0
      %s30 = sshll.u32 %s3, 4
      %s31 = int_to_ptr.hbm [resolvable:$true] %s30
      %s32 = sshll.u32 [#allocation3], 4
      %s33 = int_to_ptr.vmem [resolvable:$true] %s32
      %35 = dma.hbm_to_vmem [thread:$0]  %s31, 128, %s33, [#allocation4]
    $region17: #{tpu_custom_call.1} parent=1 // pred_fallthru
      _
    // Predicated region
    $region18: #{tpu_custom_call.1} parent=1 // pred_check
      _
    $region19: #{tpu_custom_call.1} parent=1 // pred_check_branch
      %37 = sbr.rel (0) target = $region21
    $region20: #{tpu_custom_call.1} parent=1 // pred_region
      _
    $region21: #{tpu_custom_call.1} parent=1 // pred_fallthru
      _
    // Predicated region
    $region22: #{tpu_custom_call.1} parent=1 // pred_check
      _
    $region23: #{tpu_custom_call.1} parent=1 // pred_check_branch
      %39 = sbr.rel (0) target = $region25
    $region24: #{tpu_custom_call.1} parent=1 // pred_region
      _
    $region25: #{tpu_custom_call.1} parent=1 // pred_fallthru
      _
    // Predicated region
    $region26: #{tpu_custom_call.1} parent=1 // pred_check
      _
    $region27: #{tpu_custom_call.1} parent=1 // pred_check_branch
      %41 = sbr.rel (0) target = $region29
    $region28: #{tpu_custom_call.1} parent=1 // pred_region
      _
    $region29: #{tpu_custom_call.1} parent=1 // pred_fallthru
      _
    // Predicated region
    $region30: #{tpu_custom_call.1} parent=1 // pred_check
      _
    $region31: #{tpu_custom_call.1} parent=1 // pred_check_branch
      %43 = sbr.rel (0) target = $region33
    $region32: #{tpu_custom_call.1} parent=1 // pred_region
      _
    $region33: #{tpu_custom_call.1} parent=1 // pred_fallthru
      _
    // Predicated region
    $region34: #{tpu_custom_call.1} parent=1 // pred_check
      _
    $region35: #{tpu_custom_call.1} parent=1 // pred_check_branch
      %45 = sbr.rel (0) target = $region37
    $region36: #{tpu_custom_call.1} parent=1 // pred_region
      _
    $region37: #{tpu_custom_call.1} parent=1 // pred_fallthru
      _
    // Predicated region
    $region38: #{tpu_custom_call.1} parent=1 // pred_check
      _
    $region39: #{tpu_custom_call.1} parent=1 // pred_check_branch
      %47 = sbr.rel (0) target = $region41
    $region40: #{tpu_custom_call.1} parent=1 // pred_region
      _
    $region41: #{tpu_custom_call.1} parent=1 // pred_fallthru
      _
    // Predicated region
    $region42: #{tpu_custom_call.1} parent=1 // pred_check
      _
    $region43: #{tpu_custom_call.1} parent=1 // pred_check_branch
      %49 = sbr.rel (0) target = $region45
    $region44: #{tpu_custom_call.1} parent=1 // pred_region
      _
    $region45: #{tpu_custom_call.1} parent=1 // pred_fallthru
      _
    // Predicated region
    $region46: #{tpu_custom_call.1} parent=1 // pred_check
      _
    $region47: #{tpu_custom_call.1} parent=1 // pred_check_branch
      %51 = sbr.rel (0) target = $region49
    $region48: #{tpu_custom_call.1} parent=1 // pred_region
      %53 = dma.done [#allocation4], 128
    $region49: #{tpu_custom_call.1} parent=1 // pred_fallthru
      _
    %v54 = vld [vmem:[%s0] sm:$0xff]
    %v55 = vld [vmem:[%s0 + $0x8] sm:$0xff]
    %v56 = vld [vmem:[%s0 + $0x10] sm:$0xff]
    %v57 = vld [vmem:[%s0 + $0x18] sm:$0xff]
    %v58 = vld [vmem:[%s0 + $0x20] sm:$0xff]
    %v59 = vld [vmem:[%s0 + $0x28] sm:$0xff]
    %v60 = vld [vmem:[%s0 + $0x30] sm:$0xff]
    %v61 = vld [vmem:[%s0 + $0x38] sm:$0xff]
    %v62 = vld [vmem:[%s4] sm:$0xff]
    %v63 = vld [vmem:[%s4 + $0x8] sm:$0xff]
    %v64 = vld [vmem:[%s6] sm:$0x1]
    %v66 = vperm.slane %v64, 0
    %vm68 = vcmask 130048
    %v70 = vsel %vm68, %v54, 0
    %v73 = vsel %vm68, %v55, 0
    %v76 = vsel %vm68, %v56, 0
    %v79 = vsel %vm68, %v57, 0
    %v82 = vsel %vm68, %v58, 0
    %v85 = vsel %vm68, %v59, 0
    %v88 = vsel %vm68, %v60, 0
    %v91 = vsel %vm68, %v61, 0
    %93 = vmatpush.msra.mxu0 0.0
    %94 = vmatpush.msra.mxu0 0.0
    %95 = vmatpush.msra.mxu0 0.0
    %96 = vmatpush.msra.mxu0 0.0
    %97 = vmatpush.msra.mxu0 0.0
    %98 = vmatpush.msra.mxu0 0.0
    %99 = vmatpush.msra.mxu0 0.0
    %100 = vmatpush.msra.mxu0 0.0
    %101 = vmatpush.msra.mxu0 0.0
    %102 = vmatpush.msra.mxu0 0.0
    %103 = vmatpush.msra.mxu0 0.0
    %104 = vmatpush.msra.mxu0 0.0
    %105 = vmatpush.msra.mxu0 0.0
    %106 = vmatpush.msra.mxu0 0.0
    %107 = vmatpush.msra.mxu0 %v63
    %108 = vmatpush.msra.mxu0 %v62
    %109 = vmatmul.f32.gmra.mxu0 %v70
    %v110 = vpop.f32.mrf.mxu0
    %v111 = vadd.f32 %v66, %v110
    %112 = vmatmul.f32.gmra.mxu0 %v73
    %v113 = vpop.f32.mrf.mxu0
    %v114 = vadd.f32 %v66, %v113
    %115 = vmatmul.f32.gmra.mxu0 %v76
    %v116 = vpop.f32.mrf.mxu0
    %v117 = vadd.f32 %v66, %v116
    %118 = vmatmul.f32.gmra.mxu0 %v79
    %v119 = vpop.f32.mrf.mxu0
    %v120 = vadd.f32 %v66, %v119
    %121 = vmatmul.f32.gmra.mxu0 %v82
    %v122 = vpop.f32.mrf.mxu0
    %v123 = vadd.f32 %v66, %v122
    %124 = vmatmul.f32.gmra.mxu0 %v85
    %v125 = vpop.f32.mrf.mxu0
    %v126 = vadd.f32 %v66, %v125
    %127 = vmatmul.f32.gmra.mxu0 %v88
    %v128 = vpop.f32.mrf.mxu0
    %v129 = vadd.f32 %v66, %v128
    %130 = vmatmul.f32.gmra.mxu0 %v91
    %v131 = vpop.f32.mrf.mxu0
    %v132 = vadd.f32 %v66, %v131
    %133 = vdwg.mxu0
    %v134 = vld [vmem:[%s5] sm:$0xff]
    %v135 = vld [vmem:[%s5 + $0x8] sm:$0xff]
    %v136 = vld [vmem:[%s5 + $0x10] sm:$0xff]
    %v137 = vld [vmem:[%s5 + $0x18] sm:$0xff]
    %v138 = vld [vmem:[%s1] sm:$0xff]
    %v139 = vld [vmem:[%s2] sm:$0xff]
    %v140 = vld [vmem:[#allocation3] sm:$0xff]
    %vm141 = vcmask 261120
    %v143 = vsel %vm141, %v139, 0
    %145 = vmatpush.msra.mxu0 0.0
    %146 = vmatpush.msra.mxu0 0.0
    %147 = vmatpush.msra.mxu0 0.0
    %148 = vmatpush.msra.mxu0 0.0
    %149 = vmatpush.msra.mxu0 0.0
    %150 = vmatpush.msra.mxu0 0.0
    %151 = vmatpush.msra.mxu0 0.0
    %152 = vmatpush.msra.mxu0 0.0
    %153 = vmatpush.msra.mxu0 0.0
    %154 = vmatpush.msra.mxu0 0.0
    %155 = vmatpush.msra.mxu0 0.0
    %156 = vmatpush.msra.mxu0 0.0
    %157 = vmatpush.msra.mxu0 %v137
    %158 = vmatpush.msra.mxu0 %v136
    %159 = vmatpush.msra.mxu0 %v135
    %160 = vmatpush.msra.mxu0 %v134
    %161 = vmatmul.f32.gmra.mxu0 %v143
    %v162 = vpop.f32.mrf.mxu0
    %v163 = vadd.f32 0.0, %v162
    %164 = vdwg.mxu0
    %v165 = vadd.f32 %v111, %v163
    %v166 = vxor.u32 %v165, 2147483648
    %v167 = vmul.f32 %v166, 1.442695
    %v168 = vpow.pop %v167
    %v169 = vadd.f32 %v168, 1.0
    %v170 = vrcp.pop %v169
    %v171 = vmul.f32 %v169, %v170
    %v172 = vsub.f32 1.0, %v171
    %v173 = vmul.f32 %v170, %v172
    %v174 = vadd.f32 %v170, %v173
    %vm175 = vweird.f32 %v169
    %vm176 = vweird.f32 %v170
    %vm177 = vmor %vm175, %vm176
    %v178 = vsel %vm177, %v170, %v174
    %v179 = vand.u32 2147483647, %v169
    %vm180 = vcmp.eq.f32.partialorder %v179, 8.507059e+37
    %v181 = vand.u32 %v169, 2147483648
    %v182 = vor.u32 1.1754944e-38, %v181
    %v183 = vsel %vm180, %v182, %v178
    %v184 = vmul.f32 1.0, %v183
    %v185 = vtanh.pop %v165
    %187 = vrot.lane.b32.xlu0 %v140, 32
    %v188 = vpop.permute.xlu0 %187
    %v190 = vmul.f32 %v184, %v188
    %192 = vrot.lane.b32.xlu0 %v185, 64
    %v193 = vpop.permute.xlu0 %192
    %v195 = vmul.f32 %v184, %v193
    %197 = vrot.lane.b32.xlu0 %v195, 32
    %v198 = vpop.permute.xlu0 %197
    %v200 = vadd.f32 %v190, %v198
    %v201 = vtanh.pop %v200
    %203 = vrot.lane.b32.xlu0 %v201, 64
    %v204 = vpop.permute.xlu0 %203
    %v206 = vmul.f32 %v184, %v204
    %vm207 = vcmp.gt.s32.totalorder %v138, 0
    %v208 = vsel %vm207, 1, 0
    %209 = vset.pattern.permute.xlu0 0
    %210 = vperm.xlu0 %209, %v208
    %v211 = vpop.permute.xlu0 %210
    %vm212 = vcmp.eq.s32.totalorder %v211, 1
    %213 = vrot.lane.b32.xlu0 %v139, 96
    %v214 = vpop.permute.xlu0 %213
    %v216 = vsel %vm212, %v206, %v214
    %v217 = vsel %vm212, %v200, %v188
    %219 = vrot.lane.b32.xlu0 %v216, 32
    %v220 = vpop.permute.xlu0 %219
    %v221 = vsel %vm141, %v220, 0
    %223 = vmatpush.msra.mxu0 0.0
    %224 = vmatpush.msra.mxu0 0.0
    %225 = vmatpush.msra.mxu0 0.0
    %226 = vmatpush.msra.mxu0 0.0
    %227 = vmatpush.msra.mxu0 0.0
    %228 = vmatpush.msra.mxu0 0.0
    %229 = vmatpush.msra.mxu0 0.0
    %230 = vmatpush.msra.mxu0 0.0
    %231 = vmatpush.msra.mxu0 0.0
    %232 = vmatpush.msra.mxu0 0.0
    %233 = vmatpush.msra.mxu0 0.0
    %234 = vmatpush.msra.mxu0 0.0
    %235 = vmatpush.msra.mxu0 %v137
    %236 = vmatpush.msra.mxu0 %v136
    %237 = vmatpush.msra.mxu0 %v135
    %238 = vmatpush.msra.mxu0 %v134
    %239 = vmatmul.f32.gmra.mxu0 %v221
    %v240 = vpop.f32.mrf.mxu0
    %v241 = vadd.f32 0.0, %v240
    %242 = vdwg.mxu0
    %v243 = vadd.f32 %v114, %v241
    %v244 = vxor.u32 %v243, 2147483648
    %v245 = vmul.f32 %v244, 1.442695
    %v246 = vpow.pop %v245
    %v247 = vadd.f32 %v246, 1.0
    %v248 = vrcp.pop %v247
    %v249 = vmul.f32 %v247, %v248
    %v250 = vsub.f32 1.0, %v249
    %v251 = vmul.f32 %v248, %v250
    %v252 = vadd.f32 %v248, %v251
    %vm253 = vweird.f32 %v247
    %vm254 = vweird.f32 %v248
    %vm255 = vmor %vm253, %vm254
    %v256 = vsel %vm255, %v248, %v252
    %v257 = vand.u32 2147483647, %v247
    %vm258 = vcmp.eq.f32.partialorder %v257, 8.507059e+37
    %v259 = vand.u32 %v247, 2147483648
    %v260 = vor.u32 1.1754944e-38, %v259
    %v261 = vsel %vm258, %v260, %v256
    %v262 = vmul.f32 1.0, %v261
    %v263 = vtanh.pop %v243
    %v264 = vmul.f32 %v262, %v217
    %266 = vrot.lane.b32.xlu0 %v263, 64
    %v267 = vpop.permute.xlu0 %266
    %v269 = vmul.f32 %v262, %v267
    %271 = vrot.lane.b32.xlu0 %v269, 32
    %v272 = vpop.permute.xlu0 %271
    %v274 = vadd.f32 %v264, %v272
    %v275 = vtanh.pop %v274
    %277 = vrot.lane.b32.xlu0 %v275, 64
    %v278 = vpop.permute.xlu0 %277
    %v280 = vmul.f32 %v262, %v278
    %vm281 = vcmp.gt.s32.totalorder %v138, 1
    %v282 = vsel %vm281, 1, 0
    %283 = vset.pattern.permute.xlu0 0
    %284 = vperm.xlu0 %283, %v282
    %v285 = vpop.permute.xlu0 %284
    %vm286 = vcmp.eq.s32.totalorder %v285, 1
    %v287 = vsel %vm286, %v280, %v216
    %v288 = vsel %vm286, %v274, %v217
    %290 = vrot.lane.b32.xlu0 %v287, 32
    %v291 = vpop.permute.xlu0 %290
    %v292 = vsel %vm141, %v291, 0
    %294 = vmatpush.msra.mxu0 0.0
    %295 = vmatpush.msra.mxu0 0.0
    %296 = vmatpush.msra.mxu0 0.0
    %297 = vmatpush.msra.mxu0 0.0
    %298 = vmatpush.msra.mxu0 0.0
    %299 = vmatpush.msra.mxu0 0.0
    %300 = vmatpush.msra.mxu0 0.0
    %301 = vmatpush.msra.mxu0 0.0
    %302 = vmatpush.msra.mxu0 0.0
    %303 = vmatpush.msra.mxu0 0.0
    %304 = vmatpush.msra.mxu0 0.0
    %305 = vmatpush.msra.mxu0 0.0
    %306 = vmatpush.msra.mxu0 %v137
    %307 = vmatpush.msra.mxu0 %v136
    %308 = vmatpush.msra.mxu0 %v135
    %309 = vmatpush.msra.mxu0 %v134
    %310 = vmatmul.f32.gmra.mxu0 %v292
    %v311 = vpop.f32.mrf.mxu0
    %v312 = vadd.f32 0.0, %v311
    %313 = vdwg.mxu0
    %v314 = vadd.f32 %v117, %v312
    %v315 = vxor.u32 %v314, 2147483648
    %v316 = vmul.f32 %v315, 1.442695
    %v317 = vpow.pop %v316
    %v318 = vadd.f32 %v317, 1.0
    %v319 = vrcp.pop %v318
    %v320 = vmul.f32 %v318, %v319
    %v321 = vsub.f32 1.0, %v320
    %v322 = vmul.f32 %v319, %v321
    %v323 = vadd.f32 %v319, %v322
    %vm324 = vweird.f32 %v318
    %vm325 = vweird.f32 %v319
    %vm326 = vmor %vm324, %vm325
    %v327 = vsel %vm326, %v319, %v323
    %v328 = vand.u32 2147483647, %v318
    %vm329 = vcmp.eq.f32.partialorder %v328, 8.507059e+37
    %v330 = vand.u32 %v318, 2147483648
    %v331 = vor.u32 1.1754944e-38, %v330
    %v332 = vsel %vm329, %v331, %v327
    %v333 = vmul.f32 1.0, %v332
    %v334 = vtanh.pop %v314
    %v335 = vmul.f32 %v333, %v288
    %337 = vrot.lane.b32.xlu0 %v334, 64
    %v338 = vpop.permute.xlu0 %337
    %v340 = vmul.f32 %v333, %v338
    %342 = vrot.lane.b32.xlu0 %v340, 32
    %v343 = vpop.permute.xlu0 %342
    %v345 = vadd.f32 %v335, %v343
    %v346 = vtanh.pop %v345
    %348 = vrot.lane.b32.xlu0 %v346, 64
    %v349 = vpop.permute.xlu0 %348
    %v351 = vmul.f32 %v333, %v349
    %vm352 = vcmp.gt.s32.totalorder %v138, 2
    %v353 = vsel %vm352, 1, 0
    %354 = vset.pattern.permute.xlu0 0
    %355 = vperm.xlu0 %354, %v353
    %v356 = vpop.permute.xlu0 %355
    %vm357 = vcmp.eq.s32.totalorder %v356, 1
    %v358 = vsel %vm357, %v351, %v287
    %v359 = vsel %vm357, %v345, %v288
    %361 = vrot.lane.b32.xlu0 %v358, 32
    %v362 = vpop.permute.xlu0 %361
    %v363 = vsel %vm141, %v362, 0
    %365 = vmatpush.msra.mxu0 0.0
    %366 = vmatpush.msra.mxu0 0.0
    %367 = vmatpush.msra.mxu0 0.0
    %368 = vmatpush.msra.mxu0 0.0
    %369 = vmatpush.msra.mxu0 0.0
    %370 = vmatpush.msra.mxu0 0.0
    %371 = vmatpush.msra.mxu0 0.0
    %372 = vmatpush.msra.mxu0 0.0
    %373 = vmatpush.msra.mxu0 0.0
    %374 = vmatpush.msra.mxu0 0.0
    %375 = vmatpush.msra.mxu0 0.0
    %376 = vmatpush.msra.mxu0 0.0
    %377 = vmatpush.msra.mxu0 %v137
    %378 = vmatpush.msra.mxu0 %v136
    %379 = vmatpush.msra.mxu0 %v135
    %380 = vmatpush.msra.mxu0 %v134
    %381 = vmatmul.f32.gmra.mxu0 %v363
    %v382 = vpop.f32.mrf.mxu0
    %v383 = vadd.f32 0.0, %v382
    %384 = vdwg.mxu0
    %v385 = vadd.f32 %v120, %v383
    %v386 = vxor.u32 %v385, 2147483648
    %v387 = vmul.f32 %v386, 1.442695
    %v388 = vpow.pop %v387
    %v389 = vadd.f32 %v388, 1.0
    %v390 = vrcp.pop %v389
    %v391 = vmul.f32 %v389, %v390
    %v392 = vsub.f32 1.0, %v391
    %v393 = vmul.f32 %v390, %v392
    %v394 = vadd.f32 %v390, %v393
    %vm395 = vweird.f32 %v389
    %vm396 = vweird.f32 %v390
    %vm397 = vmor %vm395, %vm396
    %v398 = vsel %vm397, %v390, %v394
    %v399 = vand.u32 2147483647, %v389
    %vm400 = vcmp.eq.f32.partialorder %v399, 8.507059e+37
    %v401 = vand.u32 %v389, 2147483648
    %v402 = vor.u32 1.1754944e-38, %v401
    %v403 = vsel %vm400, %v402, %v398
    %v404 = vmul.f32 1.0, %v403
    %v405 = vtanh.pop %v385
    %v406 = vmul.f32 %v404, %v359
    %408 = vrot.lane.b32.xlu0 %v405, 64
    %v409 = vpop.permute.xlu0 %408
    %v411 = vmul.f32 %v404, %v409
    %413 = vrot.lane.b32.xlu0 %v411, 32
    %v414 = vpop.permute.xlu0 %413
    %v416 = vadd.f32 %v406, %v414
    %v417 = vtanh.pop %v416
    %419 = vrot.lane.b32.xlu0 %v417, 64
    %v420 = vpop.permute.xlu0 %419
    %v422 = vmul.f32 %v404, %v420
    %vm423 = vcmp.gt.s32.totalorder %v138, 3
    %v424 = vsel %vm423, 1, 0
    %425 = vset.pattern.permute.xlu0 0
    %426 = vperm.xlu0 %425, %v424
    %v427 = vpop.permute.xlu0 %426
    %vm428 = vcmp.eq.s32.totalorder %v427, 1
    %v429 = vsel %vm428, %v422, %v358
    %v430 = vsel %vm428, %v416, %v359
    %432 = vrot.lane.b32.xlu0 %v429, 32
    %v433 = vpop.permute.xlu0 %432
    %v434 = vsel %vm141, %v433, 0
    %436 = vmatpush.msra.mxu0 0.0
    %437 = vmatpush.msra.mxu0 0.0
    %438 = vmatpush.msra.mxu0 0.0
    %439 = vmatpush.msra.mxu0 0.0
    %440 = vmatpush.msra.mxu0 0.0
    %441 = vmatpush.msra.mxu0 0.0
    %442 = vmatpush.msra.mxu0 0.0
    %443 = vmatpush.msra.mxu0 0.0
    %444 = vmatpush.msra.mxu0 0.0
    %445 = vmatpush.msra.mxu0 0.0
    %446 = vmatpush.msra.mxu0 0.0
    %447 = vmatpush.msra.mxu0 0.0
    %448 = vmatpush.msra.mxu0 %v137
    %449 = vmatpush.msra.mxu0 %v136
    %450 = vmatpush.msra.mxu0 %v135
    %451 = vmatpush.msra.mxu0 %v134
    %452 = vmatmul.f32.gmra.mxu0 %v434
    %v453 = vpop.f32.mrf.mxu0
    %v454 = vadd.f32 0.0, %v453
    %455 = vdwg.mxu0
    %v456 = vadd.f32 %v123, %v454
    %v457 = vxor.u32 %v456, 2147483648
    %v458 = vmul.f32 %v457, 1.442695
    %v459 = vpow.pop %v458
    %v460 = vadd.f32 %v459, 1.0
    %v461 = vrcp.pop %v460
    %v462 = vmul.f32 %v460, %v461
    %v463 = vsub.f32 1.0, %v462
    %v464 = vmul.f32 %v461, %v463
    %v465 = vadd.f32 %v461, %v464
    %vm466 = vweird.f32 %v460
    %vm467 = vweird.f32 %v461
    %vm468 = vmor %vm466, %vm467
    %v469 = vsel %vm468, %v461, %v465
    %v470 = vand.u32 2147483647, %v460
    %vm471 = vcmp.eq.f32.partialorder %v470, 8.507059e+37
    %v472 = vand.u32 %v460, 2147483648
    %v473 = vor.u32 1.1754944e-38, %v472
    %v474 = vsel %vm471, %v473, %v469
    %v475 = vmul.f32 1.0, %v474
    %v476 = vtanh.pop %v456
    %v477 = vmul.f32 %v475, %v430
    %479 = vrot.lane.b32.xlu0 %v476, 64
    %v480 = vpop.permute.xlu0 %479
    %v482 = vmul.f32 %v475, %v480
    %484 = vrot.lane.b32.xlu0 %v482, 32
    %v485 = vpop.permute.xlu0 %484
    %v487 = vadd.f32 %v477, %v485
    %v488 = vtanh.pop %v487
    %490 = vrot.lane.b32.xlu0 %v488, 64
    %v491 = vpop.permute.xlu0 %490
    %v493 = vmul.f32 %v475, %v491
    %vm494 = vcmp.gt.s32.totalorder %v138, 4
    %v495 = vsel %vm494, 1, 0
    %496 = vset.pattern.permute.xlu0 0
    %497 = vperm.xlu0 %496, %v495
    %v498 = vpop.permute.xlu0 %497
    %vm499 = vcmp.eq.s32.totalorder %v498, 1
    %v500 = vsel %vm499, %v493, %v429
    %v501 = vsel %vm499, %v487, %v430
    %503 = vrot.lane.b32.xlu0 %v500, 32
    %v504 = vpop.permute.xlu0 %503
    %v505 = vsel %vm141, %v504, 0
    %507 = vmatpush.msra.mxu0 0.0
    %508 = vmatpush.msra.mxu0 0.0
    %509 = vmatpush.msra.mxu0 0.0
    %510 = vmatpush.msra.mxu0 0.0
    %511 = vmatpush.msra.mxu0 0.0
    %512 = vmatpush.msra.mxu0 0.0
    %513 = vmatpush.msra.mxu0 0.0
    %514 = vmatpush.msra.mxu0 0.0
    %515 = vmatpush.msra.mxu0 0.0
    %516 = vmatpush.msra.mxu0 0.0
    %517 = vmatpush.msra.mxu0 0.0
    %518 = vmatpush.msra.mxu0 0.0
    %519 = vmatpush.msra.mxu0 %v137
    %520 = vmatpush.msra.mxu0 %v136
    %521 = vmatpush.msra.mxu0 %v135
    %522 = vmatpush.msra.mxu0 %v134
    %523 = vmatmul.f32.gmra.mxu0 %v505
    %v524 = vpop.f32.mrf.mxu0
    %v525 = vadd.f32 0.0, %v524
    %526 = vdwg.mxu0
    %v527 = vadd.f32 %v126, %v525
    %v528 = vxor.u32 %v527, 2147483648
    %v529 = vmul.f32 %v528, 1.442695
    %v530 = vpow.pop %v529
    %v531 = vadd.f32 %v530, 1.0
    %v532 = vrcp.pop %v531
    %v533 = vmul.f32 %v531, %v532
    %v534 = vsub.f32 1.0, %v533
    %v535 = vmul.f32 %v532, %v534
    %v536 = vadd.f32 %v532, %v535
    %vm537 = vweird.f32 %v531
    %vm538 = vweird.f32 %v532
    %vm539 = vmor %vm537, %vm538
    %v540 = vsel %vm539, %v532, %v536
    %v541 = vand.u32 2147483647, %v531
    %vm542 = vcmp.eq.f32.partialorder %v541, 8.507059e+37
    %v543 = vand.u32 %v531, 2147483648
    %v544 = vor.u32 1.1754944e-38, %v543
    %v545 = vsel %vm542, %v544, %v540
    %v546 = vmul.f32 1.0, %v545
    %v547 = vtanh.pop %v527
    %v548 = vmul.f32 %v546, %v501
    %550 = vrot.lane.b32.xlu0 %v547, 64
    %v551 = vpop.permute.xlu0 %550
    %v553 = vmul.f32 %v546, %v551
    %555 = vrot.lane.b32.xlu0 %v553, 32
    %v556 = vpop.permute.xlu0 %555
    %v558 = vadd.f32 %v548, %v556
    %v559 = vtanh.pop %v558
    %561 = vrot.lane.b32.xlu0 %v559, 64
    %v562 = vpop.permute.xlu0 %561
    %v564 = vmul.f32 %v546, %v562
    %vm565 = vcmp.gt.s32.totalorder %v138, 5
    %v566 = vsel %vm565, 1, 0
    %567 = vset.pattern.permute.xlu0 0
    %568 = vperm.xlu0 %567, %v566
    %v569 = vpop.permute.xlu0 %568
    %vm570 = vcmp.eq.s32.totalorder %v569, 1
    %v571 = vsel %vm570, %v564, %v500
    %v572 = vsel %vm570, %v558, %v501
    %574 = vrot.lane.b32.xlu0 %v571, 32
    %v575 = vpop.permute.xlu0 %574
    %v576 = vsel %vm141, %v575, 0
    %578 = vmatpush.msra.mxu0 0.0
    %579 = vmatpush.msra.mxu0 0.0
    %580 = vmatpush.msra.mxu0 0.0
    %581 = vmatpush.msra.mxu0 0.0
    %582 = vmatpush.msra.mxu0 0.0
    %583 = vmatpush.msra.mxu0 0.0
    %584 = vmatpush.msra.mxu0 0.0
    %585 = vmatpush.msra.mxu0 0.0
    %586 = vmatpush.msra.mxu0 0.0
    %587 = vmatpush.msra.mxu0 0.0
    %588 = vmatpush.msra.mxu0 0.0
    %589 = vmatpush.msra.mxu0 0.0
    %590 = vmatpush.msra.mxu0 %v137
    %591 = vmatpush.msra.mxu0 %v136
    %592 = vmatpush.msra.mxu0 %v135
    %593 = vmatpush.msra.mxu0 %v134
    %594 = vmatmul.f32.gmra.mxu0 %v576
    %v595 = vpop.f32.mrf.mxu0
    %v596 = vadd.f32 0.0, %v595
    %597 = vdwg.mxu0
    %v598 = vadd.f32 %v129, %v596
    %v599 = vxor.u32 %v598, 2147483648
    %v600 = vmul.f32 %v599, 1.442695
    %v601 = vpow.pop %v600
    %v602 = vadd.f32 %v601, 1.0
    %v603 = vrcp.pop %v602
    %v604 = vmul.f32 %v602, %v603
    %v605 = vsub.f32 1.0, %v604
    %v606 = vmul.f32 %v603, %v605
    %v607 = vadd.f32 %v603, %v606
    %vm608 = vweird.f32 %v602
    %vm609 = vweird.f32 %v603
    %vm610 = vmor %vm608, %vm609
    %v611 = vsel %vm610, %v603, %v607
    %v612 = vand.u32 2147483647, %v602
    %vm613 = vcmp.eq.f32.partialorder %v612, 8.507059e+37
    %v614 = vand.u32 %v602, 2147483648
    %v615 = vor.u32 1.1754944e-38, %v614
    %v616 = vsel %vm613, %v615, %v611
    %v617 = vmul.f32 1.0, %v616
    %v618 = vtanh.pop %v598
    %v619 = vmul.f32 %v617, %v572
    %621 = vrot.lane.b32.xlu0 %v618, 64
    %v622 = vpop.permute.xlu0 %621
    %v624 = vmul.f32 %v617, %v622
    %626 = vrot.lane.b32.xlu0 %v624, 32
    %v627 = vpop.permute.xlu0 %626
    %v629 = vadd.f32 %v619, %v627
    %v630 = vtanh.pop %v629
    %632 = vrot.lane.b32.xlu0 %v630, 64
    %v633 = vpop.permute.xlu0 %632
    %v635 = vmul.f32 %v617, %v633
    %vm636 = vcmp.gt.s32.totalorder %v138, 6
    %v637 = vsel %vm636, 1, 0
    %638 = vset.pattern.permute.xlu0 0
    %639 = vperm.xlu0 %638, %v637
    %v640 = vpop.permute.xlu0 %639
    %vm641 = vcmp.eq.s32.totalorder %v640, 1
    %v642 = vsel %vm641, %v635, %v571
    %v643 = vsel %vm641, %v629, %v572
    %645 = vrot.lane.b32.xlu0 %v642, 32
    %v646 = vpop.permute.xlu0 %645
    %v647 = vsel %vm141, %v646, 0
    %649 = vmatpush.msra.mxu0 0.0
    %650 = vmatpush.msra.mxu0 0.0
    %651 = vmatpush.msra.mxu0 0.0
    %652 = vmatpush.msra.mxu0 0.0
    %653 = vmatpush.msra.mxu0 0.0
    %654 = vmatpush.msra.mxu0 0.0
    %655 = vmatpush.msra.mxu0 0.0
    %656 = vmatpush.msra.mxu0 0.0
    %657 = vmatpush.msra.mxu0 0.0
    %658 = vmatpush.msra.mxu0 0.0
    %659 = vmatpush.msra.mxu0 0.0
    %660 = vmatpush.msra.mxu0 0.0
    %661 = vmatpush.msra.mxu0 %v137
    %662 = vmatpush.msra.mxu0 %v136
    %663 = vmatpush.msra.mxu0 %v135
    %664 = vmatpush.msra.mxu0 %v134
    %665 = vmatmul.f32.gmra.mxu0 %v647
    %v666 = vpop.f32.mrf.mxu0
    %v667 = vadd.f32 0.0, %v666
    %668 = vdwg.mxu0
    %v669 = vadd.f32 %v132, %v667
    %v670 = vxor.u32 %v669, 2147483648
    %v671 = vmul.f32 %v670, 1.442695
    %v672 = vpow.pop %v671
    %v673 = vadd.f32 %v672, 1.0
    %v674 = vrcp.pop %v673
    %v675 = vmul.f32 %v673, %v674
    %v676 = vsub.f32 1.0, %v675
    %v677 = vmul.f32 %v674, %v676
    %v678 = vadd.f32 %v674, %v677
    %vm679 = vweird.f32 %v673
    %vm680 = vweird.f32 %v674
    %vm681 = vmor %vm679, %vm680
    %v682 = vsel %vm681, %v674, %v678
    %v683 = vand.u32 2147483647, %v673
    %vm684 = vcmp.eq.f32.partialorder %v683, 8.507059e+37
    %v685 = vand.u32 %v673, 2147483648
    %v686 = vor.u32 1.1754944e-38, %v685
    %v687 = vsel %vm684, %v686, %v682
    %v688 = vmul.f32 1.0, %v687
    %v689 = vtanh.pop %v669
    %v690 = vmul.f32 %v688, %v643
    %692 = vrot.lane.b32.xlu0 %v689, 64
    %v693 = vpop.permute.xlu0 %692
    %v695 = vmul.f32 %v688, %v693
    %697 = vrot.lane.b32.xlu0 %v695, 32
    %v698 = vpop.permute.xlu0 %697
    %v700 = vadd.f32 %v690, %v698
    %v701 = vtanh.pop %v700
    %703 = vrot.lane.b32.xlu0 %v701, 64
    %v704 = vpop.permute.xlu0 %703
    %v706 = vmul.f32 %v688, %v704
    %vm707 = vcmp.gt.s32.totalorder %v138, 7
    %v708 = vsel %vm707, 1, 0
    %709 = vset.pattern.permute.xlu0 0
    %710 = vperm.xlu0 %709, %v708
    %v711 = vpop.permute.xlu0 %710
    %vm712 = vcmp.eq.s32.totalorder %v711, 1
    %v713 = vsel %vm712, %v706, %v642
    %v714 = vld [vmem:[%s7] sm:$0xff]
    %v715 = vld [vmem:[%s7 + $0x8] sm:$0xff]
    %v716 = vld [vmem:[%s7 + $0x10] sm:$0xff]
    %v717 = vld [vmem:[%s7 + $0x18] sm:$0xff]
    %v718 = vld [vmem:[%s8] sm:$0x1]
    %v720 = vperm.slane %v718, 0
    %723 = vrot.lane.b32.xlu0 %v713, 32
    %v724 = vpop.permute.xlu0 %723
    %v725 = vsel %vm141, %v724, 0
    %727 = vmatpush.msra.mxu0 0.0
    %728 = vmatpush.msra.mxu0 0.0
    %729 = vmatpush.msra.mxu0 0.0
    %730 = vmatpush.msra.mxu0 0.0
    %731 = vmatpush.msra.mxu0 0.0
    %732 = vmatpush.msra.mxu0 0.0
    %733 = vmatpush.msra.mxu0 0.0
    %734 = vmatpush.msra.mxu0 0.0
    %735 = vmatpush.msra.mxu0 0.0
    %736 = vmatpush.msra.mxu0 0.0
    %737 = vmatpush.msra.mxu0 0.0
    %738 = vmatpush.msra.mxu0 0.0
    %739 = vmatpush.msra.mxu0 %v717
    %740 = vmatpush.msra.mxu0 %v716
    %741 = vmatpush.msra.mxu0 %v715
    %742 = vmatpush.msra.mxu0 %v714
    %743 = vmatmul.f32.gmra.mxu0 %v725
    %v744 = vpop.f32.mrf.mxu0
    %v745 = vadd.f32 %v720, %v744
    %746 = vdwg.mxu0
    %v747 = vmax.f32 %v745, 0.0
    %v748 = vld [vmem:[%s9] sm:$0x1]
    %v750 = vperm.slane %v748, 0
    %v752 = vmul.f32 %v747, %v750
    %v753 = vsel %vm141, %v752, 0.0
    %754 = vadd.xlane.f32.xlu0 %v753
    %v755 = vpop.xlane.xlu0 %754
    %v756 = vld [vmem:[#allocation2] sm:$0x1]
    %v758 = vperm.slane %v756, 0
    %v760 = vadd.f32 %v755, %v758
    %vm761 = vcmask 7168
    %762 = vst.msk [vmem:[%s11] sm:$0xff] %vm761, %v760
    // Predicated region
    $region50: #{tpu_custom_call.1} parent=1 // pred_check
      _
    $region51: #{tpu_custom_call.1} parent=1 // pred_check_branch
      %764 = sbr.rel (0) target = $region53
    $region52: #{tpu_custom_call.1} parent=1 // pred_region
      _
    $region53: #{tpu_custom_call.1} parent=1 // pred_fallthru
      _
    // Predicated region
    $region54: #{tpu_custom_call.1} parent=1 // pred_check
      _
    $region55: #{tpu_custom_call.1} parent=1 // pred_check_branch
      %766 = sbr.rel (0) target = $region57
    $region56: #{tpu_custom_call.1} parent=1 // pred_region
      _
    $region57: #{tpu_custom_call.1} parent=1 // pred_fallthru
      _
    %767 = vsyncpa [#allocation4], 1

</llo_original>
